<compile_context>
chip_gen: v7x
topology: tpu7x:2x2x1
jax: 0.10.0
libtpu: 0.0.40
codegen_flags: <defaults>
</compile_context>

<pallas_src>
import jax
import jax.numpy as jnp
import numpy as np
from jax.experimental import pallas as pl
from jax.experimental.pallas import tpu as pltpu

# --- config (matches cfg['model']['arch']['head']) ---
NUM_CLASSES = 80
REG_MAX = 7
PRED_DIM = NUM_CLASSES + 4 * (REG_MAX + 1)  # 112
DPAD = 128                                  # class dim padded to one lane tile


def _head_kernel(x_ref, w_ref, b_ref, o_ref, acc_ref):
    """Grid = (batch, anchor_tile).

    x_ref  : (1, C, TA)   feature slab: channels on sublanes, anchors on lanes
    w_ref  : (DPAD, C)    class-only head weight, transposed, zero-padded to 128
    b_ref  : (DPAD, 1)    class-only head bias, zero-padded
    o_ref  : (1, DPAD, 1) per-image output block (written on the last tile)
    acc_ref: (DPAD, 1)    running max over anchors (f32 scratch)
    """
    a_idx = pl.program_id(1)

    @pl.when(a_idx == 0)
    def _init():
        acc_ref[...] = jnp.full_like(acc_ref, -jnp.inf)

    x = x_ref[0]                                               # (C, TA)
    # raw class logits for this anchor tile: (DPAD, TA) on the MXU
    s = jnp.dot(w_ref[...], x, preferred_element_type=jnp.float32)
    # running max over anchors.  sigmoid is monotone and the bias is constant
    # over anchors, so max(sigmoid(s + b)) == sigmoid(max(s) + b) exactly.
    acc_ref[...] = jnp.maximum(acc_ref[...],
                               jnp.max(s, axis=1, keepdims=True))

    @pl.when(a_idx == pl.num_programs(1) - 1)
    def _finalize():
        o_ref[0] = jax.nn.sigmoid(acc_ref[...] + b_ref[...])


def _pick_anchor_tile(A):
    # largest tile (multiple of 128 lanes) that divides A; small enough to be
    # safe against v7x's 64 MiB VMEM even with double buffering.
    for ta in (2048, 1024, 512, 256, 128):
        if A % ta == 0:
            return ta
    return A  # fall back to the full (unaligned) anchor extent


def wrapper_model_forward(tensor_img, w, b):
    """tensor_img: (N, C, H, W) or (C, H, W) float32 (NCHW, like PyTorch)."""
    if tensor_img.ndim == 3:
        tensor_img = tensor_img[None]
    if tensor_img.ndim != 4:
        raise ValueError("tensor_img.shape must be (N, C, H, W) or (C, H, W)")

    N, C, H, W = tensor_img.shape
    A = H * W
    TA = _pick_anchor_tile(A)

    # NCHW -> (N, C, A): pure reshape, no data movement (no transpose pass).
    x_feat = tensor_img.reshape(N, C, A)

    # Keep only the class columns of the head (drop the regression outputs),
    # transpose to (D, C) and zero-pad D to 128 lanes.
    w_t = jnp.zeros((DPAD, C), w.dtype).at[:NUM_CLASSES, :].set(
        w[:, :NUM_CLASSES].T)
    b_col = jnp.zeros((DPAD, 1), b.dtype).at[:NUM_CLASSES, 0].set(
        b[:NUM_CLASSES])

    grid = (N, A // TA)
    grid_spec = pltpu.PrefetchScalarGridSpec(
        num_scalar_prefetch=0,
        grid=grid,
        in_specs=[
            pl.BlockSpec((1, C, TA), lambda n, a: (n, 0, a)),
            pl.BlockSpec((DPAD, C), lambda n, a: (0, 0)),
            pl.BlockSpec((DPAD, 1), lambda n, a: (0, 0)),
        ],
        out_specs=pl.BlockSpec((1, DPAD, 1), lambda n, a: (n, 0, 0)),
        scratch_shapes=[pltpu.VMEM((DPAD, 1), jnp.float32)],
    )

    cost = pl.CostEstimate(
        flops=2 * N * A * C * DPAD,
        transcendentals=N * DPAD,
        bytes_accessed=N * A * C * 4 + DPAD * C * 4 + DPAD * 4 + N * DPAD * 4,
    )

    out = pl.pallas_call(
        _head_kernel,
        out_shape=jax.ShapeDtypeStruct((N, DPAD, 1), jnp.float32),
        grid_spec=grid_spec,
        compiler_params=pltpu.CompilerParams(
            dimension_semantics=("parallel", "arbitrary")),
        cost_estimate=cost,
    )(x_feat, w_t, b_col)

    return out[:, :NUM_CLASSES, 0]


def _reference_forward(tensor_img, w, b):
    """Pure-JAX reference mirroring the PyTorch semantics."""
    if tensor_img.ndim == 3:
        tensor_img = tensor_img[None]
    N, C, H, W = tensor_img.shape
    x_feat = jnp.transpose(tensor_img, (0, 2, 3, 1)).reshape(N, H * W, C)
    preds = jnp.einsum("nac,cd->nad", x_feat, w) + b          # (N, A, D)
    cls_scores = preds[..., :NUM_CLASSES]
    return jnp.max(jax.nn.sigmoid(cls_scores), axis=1)        # (N, NUM_CLASSES)


if __name__ == "__main__":
    key = jax.random.PRNGKey(0)
    k_img, k_w, k_b = jax.random.split(key, 3)

    # small shapes: batch=2, channels=4, spatial=16x16 -> 256 anchors
    N, C, H, W = 2, 4, 16, 16
    tensor_img = jax.random.normal(k_img, (N, C, H, W), dtype=jnp.float32)

    # deterministic synthetic head parameters
    w = jax.random.normal(k_w, (C, PRED_DIM), dtype=jnp.float32) * 0.1
    b = jax.random.normal(k_b, (PRED_DIM,), dtype=jnp.float32) * 0.1

    out = wrapper_model_forward(tensor_img, w, b)
    out = jax.block_until_ready(out)

    ref = jax.block_until_ready(_reference_forward(tensor_img, w, b))
    assert out.shape == (N, NUM_CLASSES), out.shape
    np.testing.assert_allclose(np.asarray(out), np.asarray(ref),
                               rtol=1e-4, atol=1e-4)
    print("KERNEL_OK")
</pallas_src>

<mosaic_0001>
module attributes {stable_mosaic.version = 11 : i64} {
  func.func @_head_kernel(%arg0: i32, %arg1: i32, %arg2: memref<1x4x256xf32, #tpu.memory_space<vmem>>, %arg3: memref<128x4xf32, #tpu.memory_space<vmem>>, %arg4: memref<128x1xf32, #tpu.memory_space<vmem>>, %arg5: memref<1x128x1xf32, #tpu.memory_space<vmem>>, %arg6: memref<128x1xf32, #tpu.memory_space<vmem>>) attributes {dimension_semantics = [#tpu.dimension_semantics<parallel>, #tpu.dimension_semantics<arbitrary>], iteration_bounds = array<i64: 2, 1>, scalar_prefetch = 0 : i64, scratch_operands = 1 : i64, tpu.core_type = #tpu.core_type<tc>, window_params = [{transform_indices = @transform_0, window_bounds = array<i64: 1, 4, 256>}, {pipeline_mode = #tpu.pipeline_mode<synchronous>, transform_indices = @transform_1, window_bounds = array<i64: 128, 4>}, {pipeline_mode = #tpu.pipeline_mode<synchronous>, transform_indices = @transform_2, window_bounds = array<i64: 128, 1>}, {transform_indices = @transform_3, window_bounds = array<i64: 1, 128, 1>}]} {
    %c0_i32 = arith.constant 0 : i32
    %0 = arith.cmpi eq, %arg1, %c0_i32 : i32
    %1 = arith.extui %0 : i1 to i32
    %c0_i32_0 = arith.constant 0 : i32
    %2 = arith.cmpi ne, %1, %c0_i32_0 : i32
    scf.if %2 {
      %cst_12 = arith.constant 0xFF800000 : f32
      %15 = vector.broadcast %cst_12 : f32 to vector<128x1xf32>
      %c0_13 = arith.constant 0 : index
      %c0_14 = arith.constant 0 : index
      %16 = vector.load %arg6[%c0_13, %c0_14] : memref<128x1xf32, #tpu.memory_space<vmem>>, vector<128x1xf32>
      tpu.vector_store %arg6[%c0_13, %c0_14], %15 {strides = array<i32>} : memref<128x1xf32, #tpu.memory_space<vmem>>, vector<128x1xf32>,
    } else {
    }
    %c0 = arith.constant 0 : index
    %c0_1 = arith.constant 0 : index
    %c0_2 = arith.constant 0 : index
    %3 = vector.load %arg2[%c0, %c0_1, %c0_2] : memref<1x4x256xf32, #tpu.memory_space<vmem>>, vector<1x4x256xf32>
    %4 = vector.shape_cast %3 : vector<1x4x256xf32> to vector<4x256xf32>
    %c0_3 = arith.constant 0 : index
    %c0_4 = arith.constant 0 : index
    %5 = vector.load %arg3[%c0_3, %c0_4] : memref<128x4xf32, #tpu.memory_space<vmem>>, vector<128x4xf32>
    %cst = arith.constant dense<0.000000e+00> : vector<128x256xf32>
    %6 = tpu.matmul %5, %4, %cst {dimension_numbers = #tpu.dot_dimension_numbers<[1], [0], [0], [1], [0, 0, 1, 1], [], []>} : vector<128x4xf32>, vector<4x256xf32>, vector<128x256xf32> -> vector<128x256xf32>
    %c0_5 = arith.constant 0 : index
    %c0_6 = arith.constant 0 : index
    %7 = vector.load %arg6[%c0_5, %c0_6] : memref<128x1xf32, #tpu.memory_space<vmem>>, vector<128x1xf32>
    %cst_7 = arith.constant dense<0xFF800000> : vector<128xf32>
    %8 = vector.multi_reduction <maximumf>, %6, %cst_7 [1] : vector<128x256xf32> to vector<128xf32>
    %9 = vector.shape_cast %8 : vector<128xf32> to vector<128x1xf32>
    %10 = arith.maximumf %7, %9 : vector<128x1xf32>
    %c0_8 = arith.constant 0 : index
    %c0_9 = arith.constant 0 : index
    %11 = vector.load %arg6[%c0_8, %c0_9] : memref<128x1xf32, #tpu.memory_space<vmem>>, vector<128x1xf32>
    tpu.vector_store %arg6[%c0_8, %c0_9], %10 {strides = array<i32>} : memref<128x1xf32, #tpu.memory_space<vmem>>, vector<128x1xf32>,
    %c0_i32_10 = arith.constant 0 : i32
    %12 = arith.cmpi eq, %arg1, %c0_i32_10 : i32
    %13 = arith.extui %12 : i1 to i32
    %c0_i32_11 = arith.constant 0 : i32
    %14 = arith.cmpi ne, %13, %c0_i32_11 : i32
    scf.if %14 {
      %c0_12 = arith.constant 0 : index
      %c0_13 = arith.constant 0 : index
      %15 = vector.load %arg6[%c0_12, %c0_13] : memref<128x1xf32, #tpu.memory_space<vmem>>, vector<128x1xf32>
      %c0_14 = arith.constant 0 : index
      %c0_15 = arith.constant 0 : index
      %16 = vector.load %arg4[%c0_14, %c0_15] : memref<128x1xf32, #tpu.memory_space<vmem>>, vector<128x1xf32>
      %17 = arith.addf %15, %16 : vector<128x1xf32>
      %18 = arith.negf %17 : vector<128x1xf32>
      %19 = math.exp %18 : vector<128x1xf32>
      %cst_16 = arith.constant 1.000000e+00 : f32
      %20 = vector.broadcast %cst_16 : f32 to vector<128x1xf32>
      %21 = arith.addf %20, %19 : vector<128x1xf32>
      %22 = arith.divf %20, %21 : vector<128x1xf32>
      %c0_17 = arith.constant 0 : index
      %c0_18 = arith.constant 0 : index
      %c0_19 = arith.constant 0 : index
      %23 = vector.load %arg5[%c0_17, %c0_18, %c0_19] : memref<1x128x1xf32, #tpu.memory_space<vmem>>, vector<1x128x1xf32>
      %24 = vector.shape_cast %23 : vector<1x128x1xf32> to vector<128x1xf32>
      %25 = vector.shape_cast %22 : vector<128x1xf32> to vector<1x128x1xf32>
      tpu.vector_store %arg5[%c0_17, %c0_18, %c0_19], %25 {strides = array<i32>} : memref<1x128x1xf32, #tpu.memory_space<vmem>>, vector<1x128x1xf32>,
    } else {
    }
    return
  }
  func.func @transform_0(%arg0: i32, %arg1: i32) -> (i32, i32, i32) {
    %c0_i32 = arith.constant 0 : i32
    %c0_i32_0 = arith.constant 0 : i32
    return %arg0, %c0_i32, %arg1 : i32, i32, i32
  }
  func.func @transform_1(%arg0: i32, %arg1: i32) -> (i32, i32) {
    %c0_i32 = arith.constant 0 : i32
    %c0_i32_0 = arith.constant 0 : i32
    %c0_i32_1 = arith.constant 0 : i32
    return %c0_i32, %c0_i32_0 : i32, i32
  }
  func.func @transform_2(%arg0: i32, %arg1: i32) -> (i32, i32) {
    %c0_i32 = arith.constant 0 : i32
    %c0_i32_0 = arith.constant 0 : i32
    %c0_i32_1 = arith.constant 0 : i32
    return %c0_i32, %c0_i32_0 : i32, i32
  }
  func.func @transform_3(%arg0: i32, %arg1: i32) -> (i32, i32, i32) {
    %c0_i32 = arith.constant 0 : i32
    %c0_i32_0 = arith.constant 0 : i32
    %c0_i32_1 = arith.constant 0 : i32
    return %arg0, %c0_i32, %c0_i32_0 : i32, i32, i32
  }
}

</mosaic_0001>

<llo_original>
// kernel: tpu_custom_call.1
$region0: #{tpu_custom_call.1}
  #allocation0 [shape = 'u32[]', space=smem, size = 0x4, offset = 0x4, fixed_abs, tag = 'smem constant byte address 0x4 - core index']
  #allocation1 [shape = 'u32[144,128]{1,0:T(1,128)}', space=vmem, size = 0x12000, scoped, tag = 'internal scratch']
  #allocation2 [shape = 'f32[128,1]{1,0:T(8,128)}', space=vmem, size = 0x10000, scoped, tag = 'scratch operand']
  %s0 = inlined_call_operand.vmem [shape: f32[2,4,256], index: 0, kind: input, shape index: {}]
  %s1 = inlined_call_operand.vmem [shape: f32[128,4], index: 1, kind: input, shape index: {}]
  %s2 = inlined_call_operand.vmem [shape: f32[128,1], index: 2, kind: input, shape index: {}]
  %s3 = inlined_call_operand.vmem [shape: f32[2,128,1], index: 3, kind: output, shape index: {}]
  %s4 = sld [smem:[#allocation0]]
  $region53: #{tpu_custom_call.1} parent=0
    _
  %s6 = ssub.s32 1, %s4
  %s7 = scalar_select 0, %s6, %s4
  loop: start=0, step=1, limit=4
  $region2: #{tpu_custom_call.1} parent=0 // loop_pre_header
    _
  $region3: #{tpu_custom_call.1} parent=0 // loop_header
    %s9 = sphi 0, %s13
    %p10 = scmp.ge.s32.totalorder %s9, 4
    %s16 = sphi 0, %s28
    %s17 = sphi 0, %s24
    %s18 = sphi 0, %s16
    %s19 = sphi 0, %s17
    %s20 = sphi 0, %s18
    %s21 = sphi 0, %s19
    %s33 = sphi 0, %s35
    %s36 = sphi 0, %s33
    %s37 = sphi 0, %s36
    %s53 = sphi 0, %s37
    %s57 = sphi 0, %s57
    %s59 = sphi 0, %s57
    %s60 = sphi 0, %s59
    %s74 = sphi 0, %s60
    %s78 = sphi 0, %s78
    %s80 = sphi 0, %s78
    %s81 = sphi 0, %s80
    %s95 = sphi 0, %s81
    %s101 = sphi 0, %s103
    %s104 = sphi 0, %s101
    %s105 = sphi 0, %s104
    %s121 = sphi 0, %s105
  $region4: #{tpu_custom_call.1} parent=0 // loop_header_branch
    %12 = sbr.rel (%p10) target = $region8
  $region5: #{tpu_custom_call.1} parent=0 // loop_body
    %s14 = ssub.s32 %s9, 1
    %s15 = ssub.s32 %s9, 2
    %s22 = sadd.s32 1, %s17
    %p23 = scmp.ge.s32.totalorder %s22, 1
    %s24 = scalar_select %p23, 0, %s22
    %s25 = sadd.s32 1, %s16
    %s26 = scalar_select %p23, %s25, %s16
    %p27 = scmp.ge.s32.totalorder %s26, 2
    %s28 = scalar_select %p27, 0, %s26
    %s29 = ssub.s32 %s16, %s28
    %s30 = ssub.s32 %s17, %s24
    %s31 = sor.u32 %s29, %s30
    %p32 = scmp.eq.s32.totalorder %s31, 0
    %s34 = sadd.s32 %s33, 1
    %s35 = scalar_select %p32, %s33, %s34
    %p38 = pneg %p32
    %p39 = scmp.eq.s32.totalorder %s9, 1
    %p40 = por %p38, %p39
    %p41 = scmp.ne.s32.totalorder %s33, %s36
    %p42 = scmp.eq.s32.totalorder %s9, 0
    %p43 = por %p41, %p42
    %p44 = scmp.ne.s32.totalorder %s33, %s36
    %p45 = scmp.eq.s32.totalorder %s14, 1
    %p46 = por %p44, %p45
    %p47 = scmp.ne.s32.totalorder %s36, %s37
    %p48 = scmp.eq.s32.totalorder %s14, 0
    %p49 = por %p47, %p48
    %p50 = scmp.ne.s32.totalorder %s36, %s37
    %p51 = scmp.eq.s32.totalorder %s15, 1
    %p52 = por %p50, %p51
    %p54 = scmp.ne.s32.totalorder %s37, %s53
    %p55 = scmp.eq.s32.totalorder %s15, 0
    %p56 = por %p54, %p55
    %s58 = sadd.s32 %s57, 1
    %p61 = scmp.eq.s32.totalorder %s9, 1
    %p62 = scmp.ne.s32.totalorder %s57, %s59
    %p63 = scmp.eq.s32.totalorder %s9, 0
    %p64 = por %p62, %p63
    %p65 = scmp.ne.s32.totalorder %s57, %s59
    %p66 = scmp.eq.s32.totalorder %s14, 1
    %p67 = por %p65, %p66
    %p68 = scmp.ne.s32.totalorder %s59, %s60
    %p69 = scmp.eq.s32.totalorder %s14, 0
    %p70 = por %p68, %p69
    %p71 = scmp.ne.s32.totalorder %s59, %s60
    %p72 = scmp.eq.s32.totalorder %s15, 1
    %p73 = por %p71, %p72
    %p75 = scmp.ne.s32.totalorder %s60, %s74
    %p76 = scmp.eq.s32.totalorder %s15, 0
    %p77 = por %p75, %p76
    %s79 = sadd.s32 %s78, 1
    %p82 = scmp.eq.s32.totalorder %s9, 1
    %p83 = scmp.ne.s32.totalorder %s78, %s80
    %p84 = scmp.eq.s32.totalorder %s9, 0
    %p85 = por %p83, %p84
    %p86 = scmp.ne.s32.totalorder %s78, %s80
    %p87 = scmp.eq.s32.totalorder %s14, 1
    %p88 = por %p86, %p87
    %p89 = scmp.ne.s32.totalorder %s80, %s81
    %p90 = scmp.eq.s32.totalorder %s14, 0
    %p91 = por %p89, %p90
    %p92 = scmp.ne.s32.totalorder %s80, %s81
    %p93 = scmp.eq.s32.totalorder %s15, 1
    %p94 = por %p92, %p93
    %p96 = scmp.ne.s32.totalorder %s81, %s95
    %p97 = scmp.eq.s32.totalorder %s15, 0
    %p98 = por %p96, %p97
    %s99 = ssub.s32 %s16, %s28
    %p100 = scmp.eq.s32.totalorder %s99, 0
    %s102 = sadd.s32 %s101, 1
    %s103 = scalar_select %p100, %s101, %s102
    %p106 = pneg %p100
    %p107 = scmp.eq.s32.totalorder %s9, 1
    %p108 = por %p106, %p107
    %p109 = scmp.ne.s32.totalorder %s101, %s104
    %p110 = scmp.eq.s32.totalorder %s9, 0
    %p111 = por %p109, %p110
    %p112 = scmp.ne.s32.totalorder %s101, %s104
    %p113 = scmp.eq.s32.totalorder %s14, 1
    %p114 = por %p112, %p113
    %p115 = scmp.ne.s32.totalorder %s104, %s105
    %p116 = scmp.eq.s32.totalorder %s14, 0
    %p117 = por %p115, %p116
    %p118 = scmp.ne.s32.totalorder %s104, %s105
    %p119 = scmp.eq.s32.totalorder %s15, 1
    %p120 = por %p118, %p119
    %p122 = scmp.ne.s32.totalorder %s105, %s121
    %p123 = scmp.eq.s32.totalorder %s15, 0
    %p124 = por %p122, %p123
    %p125 = scmp.le.s32.totalorder 1, %s9
    %p126 = scmp.lt.s32.totalorder %s9, 3
    %p127 = pnand %p125, %p126
    %p128 = pneg %p127
    // Predicated region
    $region9: #{tpu_custom_call.1} parent=5 // pred_check
      _
    $region10: #{tpu_custom_call.1} parent=5 // pred_check_branch
      %130 = sbr.rel (%p127) target = $region12
    $region11: #{tpu_custom_call.1} parent=5 // pred_region
      %s131 = ssub.s32 %s9, 1
      // Predicated region
      $region13: #{tpu_custom_call.1} parent=11 // pred_check
        %p132 = pneg %p70
      $region14: #{tpu_custom_call.1} parent=11 // pred_check_branch
        %134 = sbr.rel (%p132) target = $region16
      $region15: #{tpu_custom_call.1} parent=11 // pred_region
        _
      $region16: #{tpu_custom_call.1} parent=11 // pred_fallthru
        _
      // Predicated region
      $region17: #{tpu_custom_call.1} parent=11 // pred_check
        %p135 = pneg %p91
      $region18: #{tpu_custom_call.1} parent=11 // pred_check_branch
        %137 = sbr.rel (%p135) target = $region20
      $region19: #{tpu_custom_call.1} parent=11 // pred_region
        _
      $region20: #{tpu_custom_call.1} parent=11 // pred_fallthru
        _
    $region12: #{tpu_custom_call.1} parent=5 // pred_fallthru
      _
    %p138 = scmp.lt.s32.totalorder %s9, 2
    // Predicated region
    $region21: #{tpu_custom_call.1} parent=5 // pred_check
      %p139 = pneg %p138
    $region22: #{tpu_custom_call.1} parent=5 // pred_check_branch
      %141 = sbr.rel (%p139) target = $region24
    $region23: #{tpu_custom_call.1} parent=5 // pred_region
      // Predicated region
      $region25: #{tpu_custom_call.1} parent=23 // pred_check
        %p142 = pneg %p43
      $region26: #{tpu_custom_call.1} parent=23 // pred_check_branch
        %144 = sbr.rel (%p142) target = $region28
      $region27: #{tpu_custom_call.1} parent=23 // pred_region
        %s145 = smul.u32 2, %s17
        %p146 = scmp.lt.s32.totalorder %s16, 1
        %s147 = scalar_select %p146, %s16, 1
        %p148 = scmp.lt.s32.totalorder %s145, 1
        %s149 = scalar_select %p148, %s145, 1
        %s150 = smul.addr %s147, 2
        %s151 = sadd.s32 %s149, %s150
        %s152 = smul.addr %s151, 4
        %s153 = scalar_lea.vmem %s0, %s152
        %s154 = smul.u32 2, %s17
      $region28: #{tpu_custom_call.1} parent=23 // pred_fallthru
        _
    $region24: #{tpu_custom_call.1} parent=5 // pred_fallthru
      _
    %p155 = scmp.le.s32.totalorder 1, %s9
    %p156 = scmp.lt.s32.totalorder %s9, 3
    %p157 = pnand %p155, %p156
    %p158 = pneg %p157
    // Predicated region
    $region29: #{tpu_custom_call.1} parent=5 // pred_check
      _
    $region30: #{tpu_custom_call.1} parent=5 // pred_check_branch
      %160 = sbr.rel (%p157) target = $region32
    $region31: #{tpu_custom_call.1} parent=5 // pred_region
      %s161 = ssub.s32 %s9, 1
      %s162 = smul.u32 2, %s19
      %p163 = scmp.lt.s32.totalorder %s18, 1
      %s164 = scalar_select %p163, %s18, 1
      %p165 = scmp.lt.s32.totalorder %s162, 1
      %s166 = scalar_select %p165, %s162, 1
      %s167 = smul.addr %s164, 2
      %s168 = sadd.s32 %s166, %s167
      %s169 = smul.addr %s168, 4
      %s170 = scalar_lea.vmem %s0, %s169
      %p171 = pneg %p49
      %p172 = pneg %p46
      %p173 = pneg %p70
      %p174 = pneg %p67
      %p175 = pneg %p91
      %p176 = pneg %p88
      %p177 = pneg %p117
      %p178 = pneg %p114
      %p179 = scmp.lt.s32.totalorder %s18, 1
      %s180 = scalar_select %p179, %s18, 1
      %s181 = smul.addr %s180, 16
      %s182 = smul.addr %s181, 8
      %s183 = scalar_lea.vmem %s3, %s182
      %s184 = smul.u32 2, %s19
      %p185 = scmp.lt.s32.totalorder %s18, 1
      %s186 = scalar_select %p185, %s18, 1
      %p187 = scmp.lt.s32.totalorder %s184, 1
      %s188 = scalar_select %p187, %s184, 1
      %s189 = smul.addr %s186, 2
      %s190 = sadd.s32 %s188, %s189
      %s191 = smul.addr %s190, 4
      %s192 = scalar_lea.vmem %s0, %s191
      %s193 = smul.u32 2, %s19
      %p194 = scmp.lt.s32.totalorder %s18, 1
      %s195 = scalar_select %p194, %s18, 1
      %s196 = smul.addr %s195, 16
      %s197 = smul.addr %s196, 8
      %s198 = scalar_lea.vmem %s3, %s197
      %p199 = scmp.eq.s32.totalorder %s19, 0
      // Predicated region
      $region33: #{tpu_custom_call.1} parent=31 // pred_check
        %p200 = pneg %p199
      $region34: #{tpu_custom_call.1} parent=31 // pred_check_branch
        %202 = sbr.rel (%p200) target = $region36
      $region35: #{tpu_custom_call.1} parent=31 // pred_region
        %vm203 = vcmask 7168
        %204 = vst.msk [vmem:[#allocation2] sm:$0xff] %vm203, -inf
        %205 = vst.msk [vmem:[#allocation2 + $0x8] sm:$0xff] %vm203, -inf
        %206 = vst.msk [vmem:[#allocation2 + $0x10] sm:$0xff] %vm203, -inf
        %207 = vst.msk [vmem:[#allocation2 + $0x18] sm:$0xff] %vm203, -inf
        %208 = vst.msk [vmem:[#allocation2 + $0x20] sm:$0xff] %vm203, -inf
        %209 = vst.msk [vmem:[#allocation2 + $0x28] sm:$0xff] %vm203, -inf
        %210 = vst.msk [vmem:[#allocation2 + $0x30] sm:$0xff] %vm203, -inf
        %211 = vst.msk [vmem:[#allocation2 + $0x38] sm:$0xff] %vm203, -inf
        %212 = vst.msk [vmem:[#allocation2 + $0x40] sm:$0xff] %vm203, -inf
        %213 = vst.msk [vmem:[#allocation2 + $0x48] sm:$0xff] %vm203, -inf
        %214 = vst.msk [vmem:[#allocation2 + $0x50] sm:$0xff] %vm203, -inf
        %215 = vst.msk [vmem:[#allocation2 + $0x58] sm:$0xff] %vm203, -inf
        %216 = vst.msk [vmem:[#allocation2 + $0x60] sm:$0xff] %vm203, -inf
        %217 = vst.msk [vmem:[#allocation2 + $0x68] sm:$0xff] %vm203, -inf
        %218 = vst.msk [vmem:[#allocation2 + $0x70] sm:$0xff] %vm203, -inf
        %219 = vst.msk [vmem:[#allocation2 + $0x78] sm:$0xff] %vm203, -inf
      $region36: #{tpu_custom_call.1} parent=31 // pred_fallthru
        _
      %v220 = vld [vmem:[%s192] sm:$0xff]
      %v221 = vld [vmem:[%s1] sm:$0xff]
      %v222 = vld [vmem:[%s1 + $0x8] sm:$0xff]
      %v223 = vld [vmem:[%s1 + $0x10] sm:$0xff]
      %v224 = vld [vmem:[%s1 + $0x18] sm:$0xff]
      %v225 = vld [vmem:[%s1 + $0x20] sm:$0xff]
      %v226 = vld [vmem:[%s1 + $0x28] sm:$0xff]
      %v227 = vld [vmem:[%s1 + $0x30] sm:$0xff]
      %v228 = vld [vmem:[%s1 + $0x38] sm:$0xff]
      %v229 = vld [vmem:[%s1 + $0x40] sm:$0xff]
      %v230 = vld [vmem:[%s1 + $0x48] sm:$0xff]
      %v231 = vld [vmem:[%s1 + $0x50] sm:$0xff]
      %v232 = vld [vmem:[%s1 + $0x58] sm:$0xff]
      %v233 = vld [vmem:[%s1 + $0x60] sm:$0xff]
      %v234 = vld [vmem:[%s1 + $0x68] sm:$0xff]
      %v235 = vld [vmem:[%s1 + $0x70] sm:$0xff]
      %v236 = vld [vmem:[%s1 + $0x78] sm:$0xff]
      %v238 = vcombine.high %v220, %v220
      %vm239 = vcmask 31744
      %v241 = vsel %vm239, %v221, 0
      %v244 = vsel %vm239, %v222, 0
      %v247 = vsel %vm239, %v223, 0
      %v250 = vsel %vm239, %v224, 0
      %v253 = vsel %vm239, %v225, 0
      %v256 = vsel %vm239, %v226, 0
      %v259 = vsel %vm239, %v227, 0
      %v262 = vsel %vm239, %v228, 0
      %v265 = vsel %vm239, %v229, 0
      %v268 = vsel %vm239, %v230, 0
      %v271 = vsel %vm239, %v231, 0
      %v274 = vsel %vm239, %v232, 0
      %v277 = vsel %vm239, %v233, 0
      %v280 = vsel %vm239, %v234, 0
      %v283 = vsel %vm239, %v235, 0
      %v286 = vsel %vm239, %v236, 0
      %vm288 = vcmask 1043456
      %v289 = vsel %vm288, %v220, 0
      %v291 = vsel %vm288, %v238, 0
      %293 = vmatprep.subr.mxu0 %v291
      %294 = vmatpush1.msra.mxu0 %v289
      %295 = vmatprep.subr.mxu0 0.0
      %296 = vmatpush1.msra.mxu0 0.0
      %297 = vmatprep.subr.mxu0 0.0
      %298 = vmatpush1.msra.mxu0 0.0
      %299 = vmatprep.subr.mxu0 0.0
      %300 = vmatpush1.msra.mxu0 0.0
      %301 = vmatprep.subr.mxu0 0.0
      %302 = vmatpush1.msra.mxu0 0.0
      %303 = vmatprep.subr.mxu0 0.0
      %304 = vmatpush1.msra.mxu0 0.0
      %305 = vmatprep.subr.mxu0 0.0
      %306 = vmatpush1.msra.mxu0 0.0
      %307 = vmatprep.subr.mxu0 0.0
      %308 = vmatpush1.msra.mxu0 0.0
      %309 = vmatprep.subr.mxu0 0.0
      %310 = vmatpush1.msra.mxu0 0.0
      %311 = vmatprep.subr.mxu0 0.0
      %312 = vmatpush1.msra.mxu0 0.0
      %313 = vmatprep.subr.mxu0 0.0
      %314 = vmatpush1.msra.mxu0 0.0
      %315 = vmatprep.subr.mxu0 0.0
      %316 = vmatpush1.msra.mxu0 0.0
      %317 = vmatprep.subr.mxu0 0.0
      %318 = vmatpush1.msra.mxu0 0.0
      %319 = vmatprep.subr.mxu0 0.0
      %320 = vmatpush1.msra.mxu0 0.0
      %321 = vmatprep.subr.mxu0 0.0
      %322 = vmatpush1.msra.mxu0 0.0
      %323 = vmatprep.subr.mxu0 0.0
      %324 = vmatpush1.msra.mxu0 0.0
      %325 = vmatprep.subr.mxu0 0.0
      %326 = vmatpush1.msra.mxu0 0.0
      %327 = vmatprep.subr.mxu0 0.0
      %328 = vmatpush1.msra.mxu0 0.0
      %329 = vmatprep.subr.mxu0 0.0
      %330 = vmatpush1.msra.mxu0 0.0
      %331 = vmatprep.subr.mxu0 0.0
      %332 = vmatpush1.msra.mxu0 0.0
      %333 = vmatprep.subr.mxu0 0.0
      %334 = vmatpush1.msra.mxu0 0.0
      %335 = vmatprep.subr.mxu0 0.0
      %336 = vmatpush1.msra.mxu0 0.0
      %337 = vmatprep.subr.mxu0 0.0
      %338 = vmatpush1.msra.mxu0 0.0
      %339 = vmatprep.subr.mxu0 0.0
      %340 = vmatpush1.msra.mxu0 0.0
      %341 = vmatprep.subr.mxu0 0.0
      %342 = vmatpush1.msra.mxu0 0.0
      %343 = vmatprep.subr.mxu0 0.0
      %344 = vmatpush1.msra.mxu0 0.0
      %345 = vmatprep.subr.mxu0 0.0
      %346 = vmatpush1.msra.mxu0 0.0
      %347 = vmatprep.subr.mxu0 0.0
      %348 = vmatpush1.msra.mxu0 0.0
      %349 = vmatprep.subr.mxu0 0.0
      %350 = vmatpush1.msra.mxu0 0.0
      %351 = vmatprep.subr.mxu0 0.0
      %352 = vmatpush1.msra.mxu0 0.0
      %353 = vmatprep.subr.mxu0 0.0
      %354 = vmatpush1.msra.mxu0 0.0
      %355 = vmatprep.subr.mxu0 0.0
      %356 = vmatpush1.msra.mxu0 0.0
      %357 = vmatprep.mubr.f32.mxu0 0.0
      %358 = vmatmul.mubr.f32.gmra.mrb[0].mxu0 %v241
      %v359 = vpop.f32.mrb[0].mxu0
      %v360 = vadd.f32 0.0, %v359
      %v361 = vpop.f32.mrb[0].mxu0
      %v362 = vadd.f32 0.0, %v361
      %363 = vmatprep.mubr.f32.mxu0 0.0
      %364 = vmatmul.mubr.f32.gmra.mrb[0].mxu0 %v244
      %v365 = vpop.f32.mrb[0].mxu0
      %v366 = vadd.f32 0.0, %v365
      %v367 = vpop.f32.mrb[0].mxu0
      %v368 = vadd.f32 0.0, %v367
      %369 = vmatprep.mubr.f32.mxu0 0.0
      %370 = vmatmul.mubr.f32.gmra.mrb[0].mxu0 %v247
      %v371 = vpop.f32.mrb[0].mxu0
      %v372 = vadd.f32 0.0, %v371
      %v373 = vpop.f32.mrb[0].mxu0
      %v374 = vadd.f32 0.0, %v373
      %375 = vmatprep.mubr.f32.mxu0 0.0
      %376 = vmatmul.mubr.f32.gmra.mrb[0].mxu0 %v250
      %v377 = vpop.f32.mrb[0].mxu0
      %v378 = vadd.f32 0.0, %v377
      %v379 = vpop.f32.mrb[0].mxu0
      %v380 = vadd.f32 0.0, %v379
      %381 = vmatprep.mubr.f32.mxu0 0.0
      %382 = vmatmul.mubr.f32.gmra.mrb[0].mxu0 %v253
      %v383 = vpop.f32.mrb[0].mxu0
      %v384 = vadd.f32 0.0, %v383
      %v385 = vpop.f32.mrb[0].mxu0
      %v386 = vadd.f32 0.0, %v385
      %387 = vmatprep.mubr.f32.mxu0 0.0
      %388 = vmatmul.mubr.f32.gmra.mrb[0].mxu0 %v256
      %v389 = vpop.f32.mrb[0].mxu0
      %v390 = vadd.f32 0.0, %v389
      %v391 = vpop.f32.mrb[0].mxu0
      %v392 = vadd.f32 0.0, %v391
      %393 = vmatprep.mubr.f32.mxu0 0.0
      %394 = vmatmul.mubr.f32.gmra.mrb[0].mxu0 %v259
      %v395 = vpop.f32.mrb[0].mxu0
      %v396 = vadd.f32 0.0, %v395
      %v397 = vpop.f32.mrb[0].mxu0
      %v398 = vadd.f32 0.0, %v397
      %399 = vmatprep.mubr.f32.mxu0 0.0
      %400 = vmatmul.mubr.f32.gmra.mrb[0].mxu0 %v262
      %v401 = vpop.f32.mrb[0].mxu0
      %v402 = vadd.f32 0.0, %v401
      %v403 = vpop.f32.mrb[0].mxu0
      %v404 = vadd.f32 0.0, %v403
      %405 = vmatprep.mubr.f32.mxu0 0.0
      %406 = vmatmul.mubr.f32.gmra.mrb[0].mxu0 %v265
      %v407 = vpop.f32.mrb[0].mxu0
      %v408 = vadd.f32 0.0, %v407
      %v409 = vpop.f32.mrb[0].mxu0
      %v410 = vadd.f32 0.0, %v409
      %411 = vmatprep.mubr.f32.mxu0 0.0
      %412 = vmatmul.mubr.f32.gmra.mrb[0].mxu0 %v268
      %v413 = vpop.f32.mrb[0].mxu0
      %v414 = vadd.f32 0.0, %v413
      %v415 = vpop.f32.mrb[0].mxu0
      %v416 = vadd.f32 0.0, %v415
      %417 = vmatprep.mubr.f32.mxu0 0.0
      %418 = vmatmul.mubr.f32.gmra.mrb[0].mxu0 %v271
      %v419 = vpop.f32.mrb[0].mxu0
      %v420 = vadd.f32 0.0, %v419
      %v421 = vpop.f32.mrb[0].mxu0
      %v422 = vadd.f32 0.0, %v421
      %423 = vmatprep.mubr.f32.mxu0 0.0
      %424 = vmatmul.mubr.f32.gmra.mrb[0].mxu0 %v274
      %v425 = vpop.f32.mrb[0].mxu0
      %v426 = vadd.f32 0.0, %v425
      %v427 = vpop.f32.mrb[0].mxu0
      %v428 = vadd.f32 0.0, %v427
      %429 = vmatprep.mubr.f32.mxu0 0.0
      %430 = vmatmul.mubr.f32.gmra.mrb[0].mxu0 %v277
      %v431 = vpop.f32.mrb[0].mxu0
      %v432 = vadd.f32 0.0, %v431
      %v433 = vpop.f32.mrb[0].mxu0
      %v434 = vadd.f32 0.0, %v433
      %435 = vmatprep.mubr.f32.mxu0 0.0
      %436 = vmatmul.mubr.f32.gmra.mrb[0].mxu0 %v280
      %v437 = vpop.f32.mrb[0].mxu0
      %v438 = vadd.f32 0.0, %v437
      %v439 = vpop.f32.mrb[0].mxu0
      %v440 = vadd.f32 0.0, %v439
      %441 = vmatprep.mubr.f32.mxu0 0.0
      %442 = vmatmul.mubr.f32.gmra.mrb[0].mxu0 %v283
      %v443 = vpop.f32.mrb[0].mxu0
      %v444 = vadd.f32 0.0, %v443
      %v445 = vpop.f32.mrb[0].mxu0
      %v446 = vadd.f32 0.0, %v445
      %447 = vmatprep.mubr.f32.mxu0 0.0
      %448 = vmatmul.mubr.f32.gmra.mrb[0].mxu0 %v286
      %v449 = vpop.f32.mrb[0].mxu0
      %v450 = vadd.f32 0.0, %v449
      %v451 = vpop.f32.mrb[0].mxu0
      %v452 = vadd.f32 0.0, %v451
      %453 = vdwg.mxu0
      %v454 = vld [vmem:[#allocation2] sm:$0xff]
      %v455 = vld [vmem:[#allocation2 + $0x8] sm:$0xff]
      %v456 = vld [vmem:[#allocation2 + $0x10] sm:$0xff]
      %v457 = vld [vmem:[#allocation2 + $0x18] sm:$0xff]
      %v458 = vld [vmem:[#allocation2 + $0x20] sm:$0xff]
      %v459 = vld [vmem:[#allocation2 + $0x28] sm:$0xff]
      %v460 = vld [vmem:[#allocation2 + $0x30] sm:$0xff]
      %v461 = vld [vmem:[#allocation2 + $0x38] sm:$0xff]
      %v462 = vld [vmem:[#allocation2 + $0x40] sm:$0xff]
      %v463 = vld [vmem:[#allocation2 + $0x48] sm:$0xff]
      %v464 = vld [vmem:[#allocation2 + $0x50] sm:$0xff]
      %v465 = vld [vmem:[#allocation2 + $0x58] sm:$0xff]
      %v466 = vld [vmem:[#allocation2 + $0x60] sm:$0xff]
      %v467 = vld [vmem:[#allocation2 + $0x68] sm:$0xff]
      %v468 = vld [vmem:[#allocation2 + $0x70] sm:$0xff]
      %v469 = vld [vmem:[#allocation2 + $0x78] sm:$0xff]
      %v470 = vmax.f32 %v360, %v362
      %471 = vmax.xlane.f32.xlu0 %v470
      %v472 = vpop.xlane.xlu0 %471
      %v473 = vmax.f32 %v366, %v368
      %474 = vmax.xlane.f32.xlu0 %v473
      %v475 = vpop.xlane.xlu0 %474
      %v476 = vmax.f32 %v372, %v374
      %477 = vmax.xlane.f32.xlu0 %v476
      %v478 = vpop.xlane.xlu0 %477
      %v479 = vmax.f32 %v378, %v380
      %480 = vmax.xlane.f32.xlu0 %v479
      %v481 = vpop.xlane.xlu0 %480
      %v482 = vmax.f32 %v384, %v386
      %483 = vmax.xlane.f32.xlu0 %v482
      %v484 = vpop.xlane.xlu0 %483
      %v485 = vmax.f32 %v390, %v392
      %486 = vmax.xlane.f32.xlu0 %v485
      %v487 = vpop.xlane.xlu0 %486
      %v488 = vmax.f32 %v396, %v398
      %489 = vmax.xlane.f32.xlu0 %v488
      %v490 = vpop.xlane.xlu0 %489
      %v491 = vmax.f32 %v402, %v404
      %492 = vmax.xlane.f32.xlu0 %v491
      %v493 = vpop.xlane.xlu0 %492
      %v494 = vmax.f32 %v408, %v410
      %495 = vmax.xlane.f32.xlu0 %v494
      %v496 = vpop.xlane.xlu0 %495
      %v497 = vmax.f32 %v414, %v416
      %498 = vmax.xlane.f32.xlu0 %v497
      %v499 = vpop.xlane.xlu0 %498
      %v500 = vmax.f32 %v420, %v422
      %501 = vmax.xlane.f32.xlu0 %v500
      %v502 = vpop.xlane.xlu0 %501
      %v503 = vmax.f32 %v426, %v428
      %504 = vmax.xlane.f32.xlu0 %v503
      %v505 = vpop.xlane.xlu0 %504
      %v506 = vmax.f32 %v432, %v434
      %507 = vmax.xlane.f32.xlu0 %v506
      %v508 = vpop.xlane.xlu0 %507
      %v509 = vmax.f32 %v438, %v440
      %510 = vmax.xlane.f32.xlu0 %v509
      %v511 = vpop.xlane.xlu0 %510
      %v512 = vmax.f32 %v444, %v446
      %513 = vmax.xlane.f32.xlu0 %v512
      %v514 = vpop.xlane.xlu0 %513
      %v515 = vmax.f32 %v450, %v452
      %516 = vmax.xlane.f32.xlu0 %v515
      %v517 = vpop.xlane.xlu0 %516
      %v518 = vmax.f32 %v454, %v472
      %v519 = vmax.f32 %v455, %v475
      %v520 = vmax.f32 %v456, %v478
      %v521 = vmax.f32 %v457, %v481
      %v522 = vmax.f32 %v458, %v484
      %v523 = vmax.f32 %v459, %v487
      %v524 = vmax.f32 %v460, %v490
      %v525 = vmax.f32 %v461, %v493
      %v526 = vmax.f32 %v462, %v496
      %v527 = vmax.f32 %v463, %v499
      %v528 = vmax.f32 %v464, %v502
      %v529 = vmax.f32 %v465, %v505
      %v530 = vmax.f32 %v466, %v508
      %v531 = vmax.f32 %v467, %v511
      %v532 = vmax.f32 %v468, %v514
      %v533 = vmax.f32 %v469, %v517
      %vm534 = vcmask 7168
      %535 = vst.msk [vmem:[#allocation2] sm:$0xff] %vm534, %v518
      %536 = vst.msk [vmem:[#allocation2 + $0x8] sm:$0xff] %vm534, %v519
      %537 = vst.msk [vmem:[#allocation2 + $0x10] sm:$0xff] %vm534, %v520
      %538 = vst.msk [vmem:[#allocation2 + $0x18] sm:$0xff] %vm534, %v521
      %539 = vst.msk [vmem:[#allocation2 + $0x20] sm:$0xff] %vm534, %v522
      %540 = vst.msk [vmem:[#allocation2 + $0x28] sm:$0xff] %vm534, %v523
      %541 = vst.msk [vmem:[#allocation2 + $0x30] sm:$0xff] %vm534, %v524
      %542 = vst.msk [vmem:[#allocation2 + $0x38] sm:$0xff] %vm534, %v525
      %543 = vst.msk [vmem:[#allocation2 + $0x40] sm:$0xff] %vm534, %v526
      %544 = vst.msk [vmem:[#allocation2 + $0x48] sm:$0xff] %vm534, %v527
      %545 = vst.msk [vmem:[#allocation2 + $0x50] sm:$0xff] %vm534, %v528
      %546 = vst.msk [vmem:[#allocation2 + $0x58] sm:$0xff] %vm534, %v529
      %547 = vst.msk [vmem:[#allocation2 + $0x60] sm:$0xff] %vm534, %v530
      %548 = vst.msk [vmem:[#allocation2 + $0x68] sm:$0xff] %vm534, %v531
      %549 = vst.msk [vmem:[#allocation2 + $0x70] sm:$0xff] %vm534, %v532
      %550 = vst.msk [vmem:[#allocation2 + $0x78] sm:$0xff] %vm534, %v533
      // Predicated region
      $region37: #{tpu_custom_call.1} parent=31 // pred_check
        %p551 = pneg %p199
      $region38: #{tpu_custom_call.1} parent=31 // pred_check_branch
        %553 = sbr.rel (%p551) target = $region40
      $region39: #{tpu_custom_call.1} parent=31 // pred_region
        %v554 = vld [vmem:[#allocation2] sm:$0xff]
        %v555 = vld [vmem:[#allocation2 + $0x8] sm:$0xff]
        %v556 = vld [vmem:[#allocation2 + $0x10] sm:$0xff]
        %v557 = vld [vmem:[#allocation2 + $0x18] sm:$0xff]
        %v558 = vld [vmem:[#allocation2 + $0x20] sm:$0xff]
        %v559 = vld [vmem:[#allocation2 + $0x28] sm:$0xff]
        %v560 = vld [vmem:[#allocation2 + $0x30] sm:$0xff]
        %v561 = vld [vmem:[#allocation2 + $0x38] sm:$0xff]
        %v562 = vld [vmem:[#allocation2 + $0x40] sm:$0xff]
        %v563 = vld [vmem:[#allocation2 + $0x48] sm:$0xff]
        %v564 = vld [vmem:[#allocation2 + $0x50] sm:$0xff]
        %v565 = vld [vmem:[#allocation2 + $0x58] sm:$0xff]
        %v566 = vld [vmem:[#allocation2 + $0x60] sm:$0xff]
        %v567 = vld [vmem:[#allocation2 + $0x68] sm:$0xff]
        %v568 = vld [vmem:[#allocation2 + $0x70] sm:$0xff]
        %v569 = vld [vmem:[#allocation2 + $0x78] sm:$0xff]
        %v570 = vld [vmem:[%s2] sm:$0xff]
        %v571 = vld [vmem:[%s2 + $0x8] sm:$0xff]
        %v572 = vld [vmem:[%s2 + $0x10] sm:$0xff]
        %v573 = vld [vmem:[%s2 + $0x18] sm:$0xff]
        %v574 = vld [vmem:[%s2 + $0x20] sm:$0xff]
        %v575 = vld [vmem:[%s2 + $0x28] sm:$0xff]
        %v576 = vld [vmem:[%s2 + $0x30] sm:$0xff]
        %v577 = vld [vmem:[%s2 + $0x38] sm:$0xff]
        %v578 = vld [vmem:[%s2 + $0x40] sm:$0xff]
        %v579 = vld [vmem:[%s2 + $0x48] sm:$0xff]
        %v580 = vld [vmem:[%s2 + $0x50] sm:$0xff]
        %v581 = vld [vmem:[%s2 + $0x58] sm:$0xff]
        %v582 = vld [vmem:[%s2 + $0x60] sm:$0xff]
        %v583 = vld [vmem:[%s2 + $0x68] sm:$0xff]
        %v584 = vld [vmem:[%s2 + $0x70] sm:$0xff]
        %v585 = vld [vmem:[%s2 + $0x78] sm:$0xff]
        %v586 = vadd.f32 %v554, %v570
        %v587 = vadd.f32 %v555, %v571
        %v588 = vadd.f32 %v556, %v572
        %v589 = vadd.f32 %v557, %v573
        %v590 = vadd.f32 %v558, %v574
        %v591 = vadd.f32 %v559, %v575
        %v592 = vadd.f32 %v560, %v576
        %v593 = vadd.f32 %v561, %v577
        %v594 = vadd.f32 %v562, %v578
        %v595 = vadd.f32 %v563, %v579
        %v596 = vadd.f32 %v564, %v580
        %v597 = vadd.f32 %v565, %v581
        %v598 = vadd.f32 %v566, %v582
        %v599 = vadd.f32 %v567, %v583
        %v600 = vadd.f32 %v568, %v584
        %v601 = vadd.f32 %v569, %v585
        %v602 = vxor.u32 %v586, 2147483648
        %v603 = vxor.u32 %v587, 2147483648
        %v604 = vxor.u32 %v588, 2147483648
        %v605 = vxor.u32 %v589, 2147483648
        %v606 = vxor.u32 %v590, 2147483648
        %v607 = vxor.u32 %v591, 2147483648
        %v608 = vxor.u32 %v592, 2147483648
        %v609 = vxor.u32 %v593, 2147483648
        %v610 = vxor.u32 %v594, 2147483648
        %v611 = vxor.u32 %v595, 2147483648
        %v612 = vxor.u32 %v596, 2147483648
        %v613 = vxor.u32 %v597, 2147483648
        %v614 = vxor.u32 %v598, 2147483648
        %v615 = vxor.u32 %v599, 2147483648
        %v616 = vxor.u32 %v600, 2147483648
        %v617 = vxor.u32 %v601, 2147483648
        %v618 = vmul.f32 %v602, 1.442695
        %v619 = vpow.pop %v618
        %v620 = vmul.f32 %v603, 1.442695
        %v621 = vpow.pop %v620
        %v622 = vmul.f32 %v604, 1.442695
        %v623 = vpow.pop %v622
        %v624 = vmul.f32 %v605, 1.442695
        %v625 = vpow.pop %v624
        %v626 = vmul.f32 %v606, 1.442695
        %v627 = vpow.pop %v626
        %v628 = vmul.f32 %v607, 1.442695
        %v629 = vpow.pop %v628
        %v630 = vmul.f32 %v608, 1.442695
        %v631 = vpow.pop %v630
        %v632 = vmul.f32 %v609, 1.442695
        %v633 = vpow.pop %v632
        %v634 = vmul.f32 %v610, 1.442695
        %v635 = vpow.pop %v634
        %v636 = vmul.f32 %v611, 1.442695
        %v637 = vpow.pop %v636
        %v638 = vmul.f32 %v612, 1.442695
        %v639 = vpow.pop %v638
        %v640 = vmul.f32 %v613, 1.442695
        %v641 = vpow.pop %v640
        %v642 = vmul.f32 %v614, 1.442695
        %v643 = vpow.pop %v642
        %v644 = vmul.f32 %v615, 1.442695
        %v645 = vpow.pop %v644
        %v646 = vmul.f32 %v616, 1.442695
        %v647 = vpow.pop %v646
        %v648 = vmul.f32 %v617, 1.442695
        %v649 = vpow.pop %v648
        %v650 = vadd.f32 %v619, 1.0
        %v651 = vadd.f32 %v621, 1.0
        %v652 = vadd.f32 %v623, 1.0
        %v653 = vadd.f32 %v625, 1.0
        %v654 = vadd.f32 %v627, 1.0
        %v655 = vadd.f32 %v629, 1.0
        %v656 = vadd.f32 %v631, 1.0
        %v657 = vadd.f32 %v633, 1.0
        %v658 = vadd.f32 %v635, 1.0
        %v659 = vadd.f32 %v637, 1.0
        %v660 = vadd.f32 %v639, 1.0
        %v661 = vadd.f32 %v641, 1.0
        %v662 = vadd.f32 %v643, 1.0
        %v663 = vadd.f32 %v645, 1.0
        %v664 = vadd.f32 %v647, 1.0
        %v665 = vadd.f32 %v649, 1.0
        %v666 = vrcp.pop %v650
        %v667 = vmul.f32 1.0, %v666
        %v668 = vrcp.pop %v651
        %v669 = vmul.f32 1.0, %v668
        %v670 = vrcp.pop %v652
        %v671 = vmul.f32 1.0, %v670
        %v672 = vrcp.pop %v653
        %v673 = vmul.f32 1.0, %v672
        %v674 = vrcp.pop %v654
        %v675 = vmul.f32 1.0, %v674
        %v676 = vrcp.pop %v655
        %v677 = vmul.f32 1.0, %v676
        %v678 = vrcp.pop %v656
        %v679 = vmul.f32 1.0, %v678
        %v680 = vrcp.pop %v657
        %v681 = vmul.f32 1.0, %v680
        %v682 = vrcp.pop %v658
        %v683 = vmul.f32 1.0, %v682
        %v684 = vrcp.pop %v659
        %v685 = vmul.f32 1.0, %v684
        %v686 = vrcp.pop %v660
        %v687 = vmul.f32 1.0, %v686
        %v688 = vrcp.pop %v661
        %v689 = vmul.f32 1.0, %v688
        %v690 = vrcp.pop %v662
        %v691 = vmul.f32 1.0, %v690
        %v692 = vrcp.pop %v663
        %v693 = vmul.f32 1.0, %v692
        %v694 = vrcp.pop %v664
        %v695 = vmul.f32 1.0, %v694
        %v696 = vrcp.pop %v665
        %v697 = vmul.f32 1.0, %v696
        %698 = vst.msk [vmem:[%s198] sm:$0xff] %vm534, %v667
        %699 = vst.msk [vmem:[%s198 + $0x8] sm:$0xff] %vm534, %v669
        %700 = vst.msk [vmem:[%s198 + $0x10] sm:$0xff] %vm534, %v671
        %701 = vst.msk [vmem:[%s198 + $0x18] sm:$0xff] %vm534, %v673
        %702 = vst.msk [vmem:[%s198 + $0x20] sm:$0xff] %vm534, %v675
        %703 = vst.msk [vmem:[%s198 + $0x28] sm:$0xff] %vm534, %v677
        %704 = vst.msk [vmem:[%s198 + $0x30] sm:$0xff] %vm534, %v679
        %705 = vst.msk [vmem:[%s198 + $0x38] sm:$0xff] %vm534, %v681
        %706 = vst.msk [vmem:[%s198 + $0x40] sm:$0xff] %vm534, %v683
        %707 = vst.msk [vmem:[%s198 + $0x48] sm:$0xff] %vm534, %v685
        %708 = vst.msk [vmem:[%s198 + $0x50] sm:$0xff] %vm534, %v687
        %709 = vst.msk [vmem:[%s198 + $0x58] sm:$0xff] %vm534, %v689
        %710 = vst.msk [vmem:[%s198 + $0x60] sm:$0xff] %vm534, %v691
        %711 = vst.msk [vmem:[%s198 + $0x68] sm:$0xff] %vm534, %v693
        %712 = vst.msk [vmem:[%s198 + $0x70] sm:$0xff] %vm534, %v695
        %713 = vst.msk [vmem:[%s198 + $0x78] sm:$0xff] %vm534, %v697
      $region40: #{tpu_custom_call.1} parent=31 // pred_fallthru
        _
      %p714 = scmp.lt.s32.totalorder %s18, 1
      %s715 = scalar_select %p714, %s18, 1
      %s716 = smul.addr %s715, 16
      %s717 = smul.addr %s716, 8
      %s718 = scalar_lea.vmem %s3, %s717
      // Predicated region
      $region41: #{tpu_custom_call.1} parent=31 // pred_check
        %p719 = pneg %p114
      $region42: #{tpu_custom_call.1} parent=31 // pred_check_branch
        %721 = sbr.rel (%p719) target = $region44
      $region43: #{tpu_custom_call.1} parent=31 // pred_region
        _
      $region44: #{tpu_custom_call.1} parent=31 // pred_fallthru
        _
    $region32: #{tpu_custom_call.1} parent=5 // pred_fallthru
      _
    %p722 = scmp.le.s32.totalorder 2, %s9
    // Predicated region
    $region45: #{tpu_custom_call.1} parent=5 // pred_check
      %p723 = pneg %p722
    $region46: #{tpu_custom_call.1} parent=5 // pred_check_branch
      %725 = sbr.rel (%p723) target = $region48
    $region47: #{tpu_custom_call.1} parent=5 // pred_region
      %s726 = ssub.s32 %s9, 2
      // Predicated region
      $region49: #{tpu_custom_call.1} parent=47 // pred_check
        %p727 = pneg %p120
      $region50: #{tpu_custom_call.1} parent=47 // pred_check_branch
        %729 = sbr.rel (%p727) target = $region52
      $region51: #{tpu_custom_call.1} parent=47 // pred_region
        %p730 = scmp.lt.s32.totalorder %s20, 1
        %s731 = scalar_select %p730, %s20, 1
        %s732 = smul.addr %s731, 16
        %s733 = smul.addr %s732, 8
        %s734 = scalar_lea.vmem %s3, %s733
      $region52: #{tpu_custom_call.1} parent=47 // pred_fallthru
        _
    $region48: #{tpu_custom_call.1} parent=5 // pred_fallthru
      _
  $region6: #{tpu_custom_call.1} parent=0 // loop_footer
    %s13 = sadd.s32 1, %s9
  $region7: #{tpu_custom_call.1} parent=0 // loop_footer_branch
    %8 = sbr.rel target = $region3
  $region8: #{tpu_custom_call.1} parent=0 // loop_exit
    _

</llo_original>
